<compile_context>
chip_gen: v7x
topology: tpu7x:2x2x1
jax: 0.10.0
libtpu: 0.0.40
codegen_flags: <defaults>
</compile_context>

<pallas_src>
import functools

import numpy as np
import jax
import jax.numpy as jnp
from jax import lax
from jax.experimental import pallas as pl
from jax.experimental.pallas import tpu as pltpu


def _sublane_multiple(dtype):
    """Minimum second-to-last tile multiple for a dtype (8/16/32 for 4/2/1B)."""
    return max(8, 32 // np.dtype(dtype).itemsize)


def _vmem_capacity_bytes():
    """Per-core VMEM capacity; conservative (v7x-sized) fallback off-TPU."""
    try:
        cap = getattr(pltpu.get_tpu_info(), "vmem_capacity_bytes", None)
        if cap:
            return int(cap)
    except Exception:
        pass
    return 64 * 1024 * 1024


def _cedc_kernel(pred_ref, gt_ref, acc_ref, *, hw, tile_rows, n_tiles,
                 n_splits, tiles_per_split, needs_mask):
    """pred_ref: (C, TM, 128) logits; gt_ref: (TM, 128) labels (stored dtype).

    acc_ref: (acc_rows, 128) f32 resident accumulator slab, rows:
        0            : sum of per-pixel cross entropy
        1 .. C-1     : intersection  sum(p_c * onehot_c)   for classes 1..C-1
        C .. 2C-2    : prob sums     sum(p_c)
        2C-1 .. 3C-3 : gt counts     sum(onehot_c)
        rest         : zero padding (slab padded to a multiple of 8 sublanes)
    """
    i = pl.program_id(1)
    num_classes = pred_ref.shape[0]
    f32 = jnp.float32

    @pl.when(i == 0)
    def _():
        acc_ref[...] = jnp.zeros_like(acc_ref)

    def compute(masked):
        gt = gt_ref[...]                                   # (TM, 128), stored dtype
        if masked:
            # Only the globally-last tile ever has a ragged / OOB tail.
            base = (n_tiles - 1) * tile_rows * 128
            lin = (base
                   + lax.broadcasted_iota(jnp.int32, (tile_rows, 128), 0) * 128
                   + lax.broadcasted_iota(jnp.int32, (tile_rows, 128), 1))
            valid = lin < hw
            validf = valid.astype(f32)

        def load_x(c):
            x_c = pred_ref[c].astype(f32)
            if masked:
                x_c = jnp.where(valid, x_c, 0.0)           # mask BEFORE exp
            return x_c

        def hit_f(c):
            h = gt == c
            if masked:
                h = jnp.logical_and(h, valid)
            return h.astype(f32)

        # ---- pass 1: channel max, CE gathered-logit term, per-class gt counts
        m = None
        gathered = None
        for c in range(num_classes):
            x_c = load_x(c)
            h_c = hit_f(c)
            m = x_c if m is None else jnp.maximum(m, x_c)
            g = x_c * h_c
            gathered = g if gathered is None else gathered + g
            if c >= 1:
                acc_ref[2 * (num_classes - 1) + c] += jnp.sum(h_c, axis=0)

        # ---- pass 2: exponentials (single live set of per-class temporaries)
        es = []
        s = None
        for c in range(num_classes):
            e_c = jnp.exp(load_x(c) - m)
            es.append(e_c)
            s = e_c if s is None else s + e_c
        inv_s = pl.reciprocal(s, approx=True)              # EUP-only approx rcp
        ce_pix = (m + jnp.log(s)) - gathered               # lse - logit[target]
        if masked:
            ce_pix = ce_pix * validf
        acc_ref[0] += jnp.sum(ce_pix, axis=0)

        # ---- pass 3: dice statistics, class 0 (background) skipped
        for c in range(1, num_classes):
            p_c = es[c] * inv_s
            acc_ref[c] += jnp.sum(p_c * hit_f(c), axis=0)  # intersection
            if masked:
                p_c = p_c * validf                         # hit already masks inter
            acc_ref[num_classes - 1 + c] += jnp.sum(p_c, axis=0)

    if n_splits > 1:
        t = (pl.program_id(0) % n_splits) * tiles_per_split + i   # global tile id
    else:
        t = i
    has_skip = (n_splits * tiles_per_split) != n_tiles

    if needs_mask:
        @pl.when(t == n_tiles - 1)
        def _():
            compute(True)

        @pl.when(t < n_tiles - 1)                          # also skips overflow tiles
        def _():
            compute(False)
    elif has_skip:
        @pl.when(t < n_tiles)
        def _():
            compute(False)
    else:
        compute(False)


def cedc_loss(pred, target, class_num, lambda_ce=1.0, lambda_dice=1.0,
              eps=1e-8, max_tile_rows=None, vmem_budget_bytes=None,
              split_pixels_across_cores=None):
    """pred: (B, C, H, W) float logits; target: (B, 1, H, W) class ids."""
    B, C, H, W = pred.shape
    assert C == class_num, "In dice loss: predict.shape[1] != num_class"
    HW = H * W
    N = B * HW

    # ---- layout: (B, C, H, W) -> (B, C, rows, 128).  Free reshape when
    # HW % 128 == 0 (no transpose, no wrapper-side dtype conversion pass).
    hw_pad = -(-HW // 128) * 128
    rows = hw_pad // 128

    pred_flat = pred.reshape(B, C, HW)                     # keep logits dtype
    gt_flat = target.reshape(B, HW)                        # keep stored label dtype
    if hw_pad != HW:
        # TODO(synk): ragged HW still pays one pad pass; avoiding it needs an
        # in-kernel lane->(sublane,lane) reshape which is a Mosaic relayout.
        pred_flat = jnp.pad(pred_flat, ((0, 0), (0, 0), (0, hw_pad - HW)))
        gt_flat = jnp.pad(gt_flat, ((0, 0), (0, hw_pad - HW)))
    pred4 = pred_flat.reshape(B, C, rows, 128)
    gt3 = gt_flat.reshape(B, rows, 128)

    # ---- generation-aware VMEM sizing (64 MiB on v7x, 128 MiB on v5e/v6e).
    vmem_cap = _vmem_capacity_bytes()
    if max_tile_rows is None:
        max_tile_rows = 512 if vmem_cap <= (64 << 20) else 2048
    if vmem_budget_bytes is None:
        vmem_budget_bytes = min(vmem_cap // 3, 56 << 20)
    vmem_limit_bytes = int(min(vmem_cap * 3 // 4,
                               2 * vmem_budget_bytes + (16 << 20)))

    # ---- tile size: as many pixel rows per step as the VMEM budget allows.
    pred_isz = np.dtype(pred4.dtype).itemsize
    gt_isz = np.dtype(gt3.dtype).itemsize
    sub = max(_sublane_multiple(pred4.dtype), _sublane_multiple(gt3.dtype))
    per_row_bytes = 128 * (2 * (C * pred_isz + gt_isz)     # double-buffered inputs
                           + 4 * (C + 10))                 # live f32 temporaries
    tile_cap = max(sub, min(max_tile_rows, vmem_budget_bytes // per_row_bytes))
    if rows <= tile_cap:
        tile_rows = rows                                   # one tile covers all pixels
    else:
        tile_rows = max(sub, (tile_cap // sub) * sub)      # dtype tiling constraint
    n_tiles = -(-rows // tile_rows)
    needs_mask = (n_tiles * tile_rows * 128) != HW         # ragged tail handling

    # ---- v7x megacore: for odd B split the pixel-tile axis across two
    # grid-parallel halves (each gets its own accumulator slab).
    if split_pixels_across_cores is None:
        split_pixels_across_cores = (B % 2 == 1)
    n_splits = 2 if (split_pixels_across_cores and n_tiles >= 2) else 1
    tiles_per_split = -(-n_tiles // n_splits)

    acc_rows = max(8, -(-(3 * C - 2) // 8) * 8)            # slab padded to 8 sublanes

    kernel = functools.partial(
        _cedc_kernel, hw=HW, tile_rows=tile_rows, n_tiles=n_tiles,
        n_splits=n_splits, tiles_per_split=tiles_per_split, needs_mask=needs_mask)

    if n_splits == 1:
        pred_map = lambda b, i: (b, 0, i, 0)
        gt_map = lambda b, i: (b, i, 0)
    else:
        def pred_map(bs, i):
            t = (bs % n_splits) * tiles_per_split + i
            return (bs // n_splits, 0, jnp.minimum(t, n_tiles - 1), 0)

        def gt_map(bs, i):
            t = (bs % n_splits) * tiles_per_split + i
            return (bs // n_splits, jnp.minimum(t, n_tiles - 1), 0)

    acc = pl.pallas_call(
        kernel,
        out_shape=jax.ShapeDtypeStruct((B * n_splits, acc_rows, 128), jnp.float32),
        grid_spec=pltpu.PrefetchScalarGridSpec(
            num_scalar_prefetch=0,
            grid=(B * n_splits, tiles_per_split),
            in_specs=[
                pl.BlockSpec((None, C, tile_rows, 128), pred_map),
                pl.BlockSpec((None, tile_rows, 128), gt_map),
            ],
            out_specs=pl.BlockSpec((None, acc_rows, 128), lambda bs, i: (bs, 0, 0)),
        ),
        compiler_params=pltpu.CompilerParams(
            dimension_semantics=("parallel", "arbitrary"),
            vmem_limit_bytes=vmem_limit_bytes,
        ),
    )(pred4, gt3)

    # ---- final (tiny) reduction in plain JAX.
    ce_loss = jnp.sum(acc[:, 0, :]) / N
    inter = jnp.sum(acc[:, 1:C, :], axis=(0, 2))
    psum = jnp.sum(acc[:, C:2 * C - 1, :], axis=(0, 2))
    gsum = jnp.sum(acc[:, 2 * C - 1:3 * C - 2, :], axis=(0, 2))
    if class_num > 1:
        # classes 1..C-1 (background skipped, exactly like the PyTorch loop)
        dice_per_class = 1.0 - (2.0 * inter + eps) / (psum + gsum + eps)
        dice_loss = jnp.mean(dice_per_class)
    else:
        dice_loss = jnp.float32(jnp.nan)   # torch.mean(empty) is NaN too
    return lambda_ce * ce_loss + lambda_dice * dice_loss


def _reference_loss(pred, target, class_num, lambda_ce=1.0, lambda_dice=1.0,
                    eps=1e-8):
    """Plain-JAX reference mirroring the PyTorch module."""
    B, C, H, W = pred.shape
    gt = target.reshape(B, H, W).astype(jnp.int32)
    logp = jax.nn.log_softmax(pred.astype(jnp.float32), axis=1)
    onehot = jax.nn.one_hot(gt, C, axis=1)                      # (B, C, H, W)
    ce = -jnp.mean(jnp.sum(logp * onehot, axis=1))
    p = jax.nn.softmax(pred.astype(jnp.float32), axis=1)
    losses = []
    for i in range(1, class_num):
        pi = p[:, i]
        ti = (gt == i).astype(jnp.float32)
        intersection = 2.0 * jnp.sum(pi * ti) + eps
        union = jnp.sum(pi) + jnp.sum(ti) + eps
        losses.append(1.0 - intersection / union)
    dice = jnp.mean(jnp.stack(losses))
    return lambda_ce * ce + lambda_dice * dice


if __name__ == "__main__":
    key = jax.random.PRNGKey(0)
    k1, k2, k3, k4 = jax.random.split(key, 4)

    # Tolerance is loosened slightly vs f32 exactness because the kernel uses
    # the EUP approximate reciprocal for the softmax denominator.
    ATOL = RTOL = 3e-4

    # Case 1: even batch, HW % 128 == 0 -> unmasked fast path, no core split.
    B, C, H, W = 2, 4, 16, 16
    pred = jax.random.normal(k1, (B, C, H, W), dtype=jnp.float32)
    # target arrives as (B, 1, H, W) floats holding class ids, like the module
    target = jax.random.randint(k2, (B, 1, H, W), 0, C).astype(jnp.float32)
    loss = jax.block_until_ready(cedc_loss(pred, target, class_num=C,
                                           lambda_ce=1.0, lambda_dice=1.0))
    ref = _reference_loss(pred, target, class_num=C)
    assert jnp.allclose(loss, ref, atol=ATOL, rtol=RTOL), (loss, ref)

    # Case 2: odd batch + ragged H*W -> exercises the padded layout, the
    # pl.when-gated masked tail, and the pixel-axis core split (two parallel
    # accumulator slabs summed in the epilogue).  max_tile_rows forced small
    # so several tiles exist at this toy size.
    B2, C2, H2, W2 = 1, 3, 47, 49
    pred2 = jax.random.normal(k3, (B2, C2, H2, W2), dtype=jnp.float32)
    target2 = jax.random.randint(k4, (B2, 1, H2, W2), 0, C2).astype(jnp.float32)
    loss2 = jax.block_until_ready(cedc_loss(pred2, target2, class_num=C2,
                                            max_tile_rows=8))
    ref2 = _reference_loss(pred2, target2, class_num=C2)
    assert jnp.allclose(loss2, ref2, atol=ATOL, rtol=RTOL), (loss2, ref2)

    print("KERNEL_OK")
</pallas_src>

<mosaic_0001>
module attributes {stable_mosaic.version = 11 : i64} {
  func.func @_cedc_kernel(%arg0: i32, %arg1: i32, %arg2: memref<1x4x2x128xf32, #tpu.memory_space<vmem>>, %arg3: memref<1x2x128xf32, #tpu.memory_space<vmem>>, %arg4: memref<1x16x128xf32, #tpu.memory_space<vmem>>) attributes {dimension_semantics = [#tpu.dimension_semantics<parallel>, #tpu.dimension_semantics<arbitrary>], iteration_bounds = array<i64: 2, 1>, scalar_prefetch = 0 : i64, scratch_operands = 0 : i64, tpu.core_type = #tpu.core_type<tc>, window_params = [{transform_indices = @transform_0, window_bounds = array<i64: 1, 4, 2, 128>}, {transform_indices = @transform_1, window_bounds = array<i64: 1, 2, 128>}, {transform_indices = @transform_2, window_bounds = array<i64: 1, 16, 128>}]} {
    %c0_i32 = arith.constant 0 : i32
    %0 = arith.cmpi eq, %arg1, %c0_i32 : i32
    %1 = arith.extui %0 : i1 to i32
    %c0_i32_0 = arith.constant 0 : i32
    %2 = arith.cmpi ne, %1, %c0_i32_0 : i32
    scf.if %2 {
      %cst_102 = arith.constant 0.000000e+00 : f32
      %150 = vector.broadcast %cst_102 : f32 to vector<16x128xf32>
      %c0_103 = arith.constant 0 : index
      %c0_104 = arith.constant 0 : index
      %c0_105 = arith.constant 0 : index
      %151 = vector.load %arg4[%c0_103, %c0_104, %c0_105] : memref<1x16x128xf32, #tpu.memory_space<vmem>>, vector<1x16x128xf32>
      %152 = vector.shape_cast %151 : vector<1x16x128xf32> to vector<16x128xf32>
      %153 = vector.shape_cast %150 : vector<16x128xf32> to vector<1x16x128xf32>
      tpu.vector_store %arg4[%c0_103, %c0_104, %c0_105], %153 {strides = array<i32>} : memref<1x16x128xf32, #tpu.memory_space<vmem>>, vector<1x16x128xf32>,
    } else {
    }
    %c0 = arith.constant 0 : index
    %c0_1 = arith.constant 0 : index
    %c0_2 = arith.constant 0 : index
    %3 = vector.load %arg3[%c0, %c0_1, %c0_2] : memref<1x2x128xf32, #tpu.memory_space<vmem>>, vector<1x2x128xf32>
    %4 = vector.shape_cast %3 : vector<1x2x128xf32> to vector<2x128xf32>
    %c0_3 = arith.constant 0 : index
    %c0_4 = arith.constant 0 : index
    %c0_5 = arith.constant 0 : index
    %c0_6 = arith.constant 0 : index
    %5 = vector.load %arg2[%c0_3, %c0_4, %c0_5, %c0_6] : memref<1x4x2x128xf32, #tpu.memory_space<vmem>>, vector<1x1x2x128xf32>
    %6 = vector.shape_cast %5 : vector<1x1x2x128xf32> to vector<2x128xf32>
    %cst = arith.constant 0.000000e+00 : f32
    %7 = vector.broadcast %cst : f32 to vector<2x128xf32>
    %8 = arith.cmpf oeq, %4, %7 : vector<2x128xf32>
    %9 = arith.extui %8 : vector<2x128xi1> to vector<2x128xi32>
    %10 = arith.sitofp %9 : vector<2x128xi32> to vector<2x128xf32>
    %11 = arith.mulf %6, %10 : vector<2x128xf32>
    %c0_7 = arith.constant 0 : index
    %c1 = arith.constant 1 : index
    %c0_8 = arith.constant 0 : index
    %c0_9 = arith.constant 0 : index
    %12 = vector.load %arg2[%c0_7, %c1, %c0_8, %c0_9] : memref<1x4x2x128xf32, #tpu.memory_space<vmem>>, vector<1x1x2x128xf32>
    %13 = vector.shape_cast %12 : vector<1x1x2x128xf32> to vector<2x128xf32>
    %cst_10 = arith.constant 1.000000e+00 : f32
    %14 = vector.broadcast %cst_10 : f32 to vector<2x128xf32>
    %15 = arith.cmpf oeq, %4, %14 : vector<2x128xf32>
    %16 = arith.extui %15 : vector<2x128xi1> to vector<2x128xi32>
    %17 = arith.sitofp %16 : vector<2x128xi32> to vector<2x128xf32>
    %18 = arith.maximumf %6, %13 : vector<2x128xf32>
    %19 = arith.mulf %13, %17 : vector<2x128xf32>
    %20 = arith.addf %11, %19 : vector<2x128xf32>
    %c0_11 = arith.constant 0 : index
    %c7 = arith.constant 7 : index
    %c0_12 = arith.constant 0 : index
    %21 = vector.load %arg4[%c0_11, %c7, %c0_12] : memref<1x16x128xf32, #tpu.memory_space<vmem>>, vector<1x1x128xf32>
    %22 = vector.shape_cast %21 : vector<1x1x128xf32> to vector<128xf32>
    %cst_13 = arith.constant dense<0.000000e+00> : vector<128xf32>
    %23 = vector.multi_reduction <add>, %17, %cst_13 [0] : vector<2x128xf32> to vector<128xf32>
    %24 = arith.addf %22, %23 : vector<128xf32>
    %c0_14 = arith.constant 0 : index
    %c7_15 = arith.constant 7 : index
    %c0_16 = arith.constant 0 : index
    %25 = vector.load %arg4[%c0_14, %c7_15, %c0_16] : memref<1x16x128xf32, #tpu.memory_space<vmem>>, vector<1x1x128xf32>
    %26 = vector.shape_cast %25 : vector<1x1x128xf32> to vector<128xf32>
    %27 = vector.shape_cast %24 : vector<128xf32> to vector<1x1x128xf32>
    tpu.vector_store %arg4[%c0_14, %c7_15, %c0_16], %27 {strides = array<i32>} : memref<1x16x128xf32, #tpu.memory_space<vmem>>, vector<1x1x128xf32>,
    %c0_17 = arith.constant 0 : index
    %c2 = arith.constant 2 : index
    %c0_18 = arith.constant 0 : index
    %c0_19 = arith.constant 0 : index
    %28 = vector.load %arg2[%c0_17, %c2, %c0_18, %c0_19] : memref<1x4x2x128xf32, #tpu.memory_space<vmem>>, vector<1x1x2x128xf32>
    %29 = vector.shape_cast %28 : vector<1x1x2x128xf32> to vector<2x128xf32>
    %cst_20 = arith.constant 2.000000e+00 : f32
    %30 = vector.broadcast %cst_20 : f32 to vector<2x128xf32>
    %31 = arith.cmpf oeq, %4, %30 : vector<2x128xf32>
    %32 = arith.extui %31 : vector<2x128xi1> to vector<2x128xi32>
    %33 = arith.sitofp %32 : vector<2x128xi32> to vector<2x128xf32>
    %34 = arith.maximumf %18, %29 : vector<2x128xf32>
    %35 = arith.mulf %29, %33 : vector<2x128xf32>
    %36 = arith.addf %20, %35 : vector<2x128xf32>
    %c0_21 = arith.constant 0 : index
    %c8 = arith.constant 8 : index
    %c0_22 = arith.constant 0 : index
    %37 = vector.load %arg4[%c0_21, %c8, %c0_22] : memref<1x16x128xf32, #tpu.memory_space<vmem>>, vector<1x1x128xf32>
    %38 = vector.shape_cast %37 : vector<1x1x128xf32> to vector<128xf32>
    %cst_23 = arith.constant dense<0.000000e+00> : vector<128xf32>
    %39 = vector.multi_reduction <add>, %33, %cst_23 [0] : vector<2x128xf32> to vector<128xf32>
    %40 = arith.addf %38, %39 : vector<128xf32>
    %c0_24 = arith.constant 0 : index
    %c8_25 = arith.constant 8 : index
    %c0_26 = arith.constant 0 : index
    %41 = vector.load %arg4[%c0_24, %c8_25, %c0_26] : memref<1x16x128xf32, #tpu.memory_space<vmem>>, vector<1x1x128xf32>
    %42 = vector.shape_cast %41 : vector<1x1x128xf32> to vector<128xf32>
    %43 = vector.shape_cast %40 : vector<128xf32> to vector<1x1x128xf32>
    tpu.vector_store %arg4[%c0_24, %c8_25, %c0_26], %43 {strides = array<i32>} : memref<1x16x128xf32, #tpu.memory_space<vmem>>, vector<1x1x128xf32>,
    %c0_27 = arith.constant 0 : index
    %c3 = arith.constant 3 : index
    %c0_28 = arith.constant 0 : index
    %c0_29 = arith.constant 0 : index
    %44 = vector.load %arg2[%c0_27, %c3, %c0_28, %c0_29] : memref<1x4x2x128xf32, #tpu.memory_space<vmem>>, vector<1x1x2x128xf32>
    %45 = vector.shape_cast %44 : vector<1x1x2x128xf32> to vector<2x128xf32>
    %cst_30 = arith.constant 3.000000e+00 : f32
    %46 = vector.broadcast %cst_30 : f32 to vector<2x128xf32>
    %47 = arith.cmpf oeq, %4, %46 : vector<2x128xf32>
    %48 = arith.extui %47 : vector<2x128xi1> to vector<2x128xi32>
    %49 = arith.sitofp %48 : vector<2x128xi32> to vector<2x128xf32>
    %50 = arith.maximumf %34, %45 : vector<2x128xf32>
    %51 = arith.mulf %45, %49 : vector<2x128xf32>
    %52 = arith.addf %36, %51 : vector<2x128xf32>
    %c0_31 = arith.constant 0 : index
    %c9 = arith.constant 9 : index
    %c0_32 = arith.constant 0 : index
    %53 = vector.load %arg4[%c0_31, %c9, %c0_32] : memref<1x16x128xf32, #tpu.memory_space<vmem>>, vector<1x1x128xf32>
    %54 = vector.shape_cast %53 : vector<1x1x128xf32> to vector<128xf32>
    %cst_33 = arith.constant dense<0.000000e+00> : vector<128xf32>
    %55 = vector.multi_reduction <add>, %49, %cst_33 [0] : vector<2x128xf32> to vector<128xf32>
    %56 = arith.addf %54, %55 : vector<128xf32>
    %c0_34 = arith.constant 0 : index
    %c9_35 = arith.constant 9 : index
    %c0_36 = arith.constant 0 : index
    %57 = vector.load %arg4[%c0_34, %c9_35, %c0_36] : memref<1x16x128xf32, #tpu.memory_space<vmem>>, vector<1x1x128xf32>
    %58 = vector.shape_cast %57 : vector<1x1x128xf32> to vector<128xf32>
    %59 = vector.shape_cast %56 : vector<128xf32> to vector<1x1x128xf32>
    tpu.vector_store %arg4[%c0_34, %c9_35, %c0_36], %59 {strides = array<i32>} : memref<1x16x128xf32, #tpu.memory_space<vmem>>, vector<1x1x128xf32>,
    %c0_37 = arith.constant 0 : index
    %c0_38 = arith.constant 0 : index
    %c0_39 = arith.constant 0 : index
    %c0_40 = arith.constant 0 : index
    %60 = vector.load %arg2[%c0_37, %c0_38, %c0_39, %c0_40] : memref<1x4x2x128xf32, #tpu.memory_space<vmem>>, vector<1x1x2x128xf32>
    %61 = vector.shape_cast %60 : vector<1x1x2x128xf32> to vector<2x128xf32>
    %62 = arith.subf %61, %50 : vector<2x128xf32>
    %63 = math.exp %62 : vector<2x128xf32>
    %c0_41 = arith.constant 0 : index
    %c1_42 = arith.constant 1 : index
    %c0_43 = arith.constant 0 : index
    %c0_44 = arith.constant 0 : index
    %64 = vector.load %arg2[%c0_41, %c1_42, %c0_43, %c0_44] : memref<1x4x2x128xf32, #tpu.memory_space<vmem>>, vector<1x1x2x128xf32>
    %65 = vector.shape_cast %64 : vector<1x1x2x128xf32> to vector<2x128xf32>
    %66 = arith.subf %65, %50 : vector<2x128xf32>
    %67 = math.exp %66 : vector<2x128xf32>
    %68 = arith.addf %63, %67 : vector<2x128xf32>
    %c0_45 = arith.constant 0 : index
    %c2_46 = arith.constant 2 : index
    %c0_47 = arith.constant 0 : index
    %c0_48 = arith.constant 0 : index
    %69 = vector.load %arg2[%c0_45, %c2_46, %c0_47, %c0_48] : memref<1x4x2x128xf32, #tpu.memory_space<vmem>>, vector<1x1x2x128xf32>
    %70 = vector.shape_cast %69 : vector<1x1x2x128xf32> to vector<2x128xf32>
    %71 = arith.subf %70, %50 : vector<2x128xf32>
    %72 = math.exp %71 : vector<2x128xf32>
    %73 = arith.addf %68, %72 : vector<2x128xf32>
    %c0_49 = arith.constant 0 : index
    %c3_50 = arith.constant 3 : index
    %c0_51 = arith.constant 0 : index
    %c0_52 = arith.constant 0 : index
    %74 = vector.load %arg2[%c0_49, %c3_50, %c0_51, %c0_52] : memref<1x4x2x128xf32, #tpu.memory_space<vmem>>, vector<1x1x2x128xf32>
    %75 = vector.shape_cast %74 : vector<1x1x2x128xf32> to vector<2x128xf32>
    %76 = arith.subf %75, %50 : vector<2x128xf32>
    %77 = math.exp %76 : vector<2x128xf32>
    %78 = arith.addf %73, %77 : vector<2x128xf32>
    %79 = tpu.reciprocal %78 {approx = true} : vector<2x128xf32> -> vector<2x128xf32>
    %80 = math.log %78 : vector<2x128xf32>
    %81 = arith.addf %50, %80 : vector<2x128xf32>
    %82 = arith.subf %81, %52 : vector<2x128xf32>
    %c0_53 = arith.constant 0 : index
    %c0_54 = arith.constant 0 : index
    %c0_55 = arith.constant 0 : index
    %83 = vector.load %arg4[%c0_53, %c0_54, %c0_55] : memref<1x16x128xf32, #tpu.memory_space<vmem>>, vector<1x1x128xf32>
    %84 = vector.shape_cast %83 : vector<1x1x128xf32> to vector<128xf32>
    %cst_56 = arith.constant dense<0.000000e+00> : vector<128xf32>
    %85 = vector.multi_reduction <add>, %82, %cst_56 [0] : vector<2x128xf32> to vector<128xf32>
    %86 = arith.addf %84, %85 : vector<128xf32>
    %c0_57 = arith.constant 0 : index
    %c0_58 = arith.constant 0 : index
    %c0_59 = arith.constant 0 : index
    %87 = vector.load %arg4[%c0_57, %c0_58, %c0_59] : memref<1x16x128xf32, #tpu.memory_space<vmem>>, vector<1x1x128xf32>
    %88 = vector.shape_cast %87 : vector<1x1x128xf32> to vector<128xf32>
    %89 = vector.shape_cast %86 : vector<128xf32> to vector<1x1x128xf32>
    tpu.vector_store %arg4[%c0_57, %c0_58, %c0_59], %89 {strides = array<i32>} : memref<1x16x128xf32, #tpu.memory_space<vmem>>, vector<1x1x128xf32>,
    %90 = arith.mulf %67, %79 : vector<2x128xf32>
    %c0_60 = arith.constant 0 : index
    %c1_61 = arith.constant 1 : index
    %c0_62 = arith.constant 0 : index
    %91 = vector.load %arg4[%c0_60, %c1_61, %c0_62] : memref<1x16x128xf32, #tpu.memory_space<vmem>>, vector<1x1x128xf32>
    %92 = vector.shape_cast %91 : vector<1x1x128xf32> to vector<128xf32>
    %cst_63 = arith.constant 1.000000e+00 : f32
    %93 = vector.broadcast %cst_63 : f32 to vector<2x128xf32>
    %94 = arith.cmpf oeq, %4, %93 : vector<2x128xf32>
    %95 = arith.extui %94 : vector<2x128xi1> to vector<2x128xi32>
    %96 = arith.sitofp %95 : vector<2x128xi32> to vector<2x128xf32>
    %97 = arith.mulf %90, %96 : vector<2x128xf32>
    %cst_64 = arith.constant dense<0.000000e+00> : vector<128xf32>
    %98 = vector.multi_reduction <add>, %97, %cst_64 [0] : vector<2x128xf32> to vector<128xf32>
    %99 = arith.addf %92, %98 : vector<128xf32>
    %c0_65 = arith.constant 0 : index
    %c1_66 = arith.constant 1 : index
    %c0_67 = arith.constant 0 : index
    %100 = vector.load %arg4[%c0_65, %c1_66, %c0_67] : memref<1x16x128xf32, #tpu.memory_space<vmem>>, vector<1x1x128xf32>
    %101 = vector.shape_cast %100 : vector<1x1x128xf32> to vector<128xf32>
    %102 = vector.shape_cast %99 : vector<128xf32> to vector<1x1x128xf32>
    tpu.vector_store %arg4[%c0_65, %c1_66, %c0_67], %102 {strides = array<i32>} : memref<1x16x128xf32, #tpu.memory_space<vmem>>, vector<1x1x128xf32>,
    %c0_68 = arith.constant 0 : index
    %c4 = arith.constant 4 : index
    %c0_69 = arith.constant 0 : index
    %103 = vector.load %arg4[%c0_68, %c4, %c0_69] : memref<1x16x128xf32, #tpu.memory_space<vmem>>, vector<1x1x128xf32>
    %104 = vector.shape_cast %103 : vector<1x1x128xf32> to vector<128xf32>
    %cst_70 = arith.constant dense<0.000000e+00> : vector<128xf32>
    %105 = vector.multi_reduction <add>, %90, %cst_70 [0] : vector<2x128xf32> to vector<128xf32>
    %106 = arith.addf %104, %105 : vector<128xf32>
    %c0_71 = arith.constant 0 : index
    %c4_72 = arith.constant 4 : index
    %c0_73 = arith.constant 0 : index
    %107 = vector.load %arg4[%c0_71, %c4_72, %c0_73] : memref<1x16x128xf32, #tpu.memory_space<vmem>>, vector<1x1x128xf32>
    %108 = vector.shape_cast %107 : vector<1x1x128xf32> to vector<128xf32>
    %109 = vector.shape_cast %106 : vector<128xf32> to vector<1x1x128xf32>
    tpu.vector_store %arg4[%c0_71, %c4_72, %c0_73], %109 {strides = array<i32>} : memref<1x16x128xf32, #tpu.memory_space<vmem>>, vector<1x1x128xf32>,
    %110 = arith.mulf %72, %79 : vector<2x128xf32>
    %c0_74 = arith.constant 0 : index
    %c2_75 = arith.constant 2 : index
    %c0_76 = arith.constant 0 : index
    %111 = vector.load %arg4[%c0_74, %c2_75, %c0_76] : memref<1x16x128xf32, #tpu.memory_space<vmem>>, vector<1x1x128xf32>
    %112 = vector.shape_cast %111 : vector<1x1x128xf32> to vector<128xf32>
    %cst_77 = arith.constant 2.000000e+00 : f32
    %113 = vector.broadcast %cst_77 : f32 to vector<2x128xf32>
    %114 = arith.cmpf oeq, %4, %113 : vector<2x128xf32>
    %115 = arith.extui %114 : vector<2x128xi1> to vector<2x128xi32>
    %116 = arith.sitofp %115 : vector<2x128xi32> to vector<2x128xf32>
    %117 = arith.mulf %110, %116 : vector<2x128xf32>
    %cst_78 = arith.constant dense<0.000000e+00> : vector<128xf32>
    %118 = vector.multi_reduction <add>, %117, %cst_78 [0] : vector<2x128xf32> to vector<128xf32>
    %119 = arith.addf %112, %118 : vector<128xf32>
    %c0_79 = arith.constant 0 : index
    %c2_80 = arith.constant 2 : index
    %c0_81 = arith.constant 0 : index
    %120 = vector.load %arg4[%c0_79, %c2_80, %c0_81] : memref<1x16x128xf32, #tpu.memory_space<vmem>>, vector<1x1x128xf32>
    %121 = vector.shape_cast %120 : vector<1x1x128xf32> to vector<128xf32>
    %122 = vector.shape_cast %119 : vector<128xf32> to vector<1x1x128xf32>
    tpu.vector_store %arg4[%c0_79, %c2_80, %c0_81], %122 {strides = array<i32>} : memref<1x16x128xf32, #tpu.memory_space<vmem>>, vector<1x1x128xf32>,
    %c0_82 = arith.constant 0 : index
    %c5 = arith.constant 5 : index
    %c0_83 = arith.constant 0 : index
    %123 = vector.load %arg4[%c0_82, %c5, %c0_83] : memref<1x16x128xf32, #tpu.memory_space<vmem>>, vector<1x1x128xf32>
    %124 = vector.shape_cast %123 : vector<1x1x128xf32> to vector<128xf32>
    %cst_84 = arith.constant dense<0.000000e+00> : vector<128xf32>
    %125 = vector.multi_reduction <add>, %110, %cst_84 [0] : vector<2x128xf32> to vector<128xf32>
    %126 = arith.addf %124, %125 : vector<128xf32>
    %c0_85 = arith.constant 0 : index
    %c5_86 = arith.constant 5 : index
    %c0_87 = arith.constant 0 : index
    %127 = vector.load %arg4[%c0_85, %c5_86, %c0_87] : memref<1x16x128xf32, #tpu.memory_space<vmem>>, vector<1x1x128xf32>
    %128 = vector.shape_cast %127 : vector<1x1x128xf32> to vector<128xf32>
    %129 = vector.shape_cast %126 : vector<128xf32> to vector<1x1x128xf32>
    tpu.vector_store %arg4[%c0_85, %c5_86, %c0_87], %129 {strides = array<i32>} : memref<1x16x128xf32, #tpu.memory_space<vmem>>, vector<1x1x128xf32>,
    %130 = arith.mulf %77, %79 : vector<2x128xf32>
    %c0_88 = arith.constant 0 : index
    %c3_89 = arith.constant 3 : index
    %c0_90 = arith.constant 0 : index
    %131 = vector.load %arg4[%c0_88, %c3_89, %c0_90] : memref<1x16x128xf32, #tpu.memory_space<vmem>>, vector<1x1x128xf32>
    %132 = vector.shape_cast %131 : vector<1x1x128xf32> to vector<128xf32>
    %cst_91 = arith.constant 3.000000e+00 : f32
    %133 = vector.broadcast %cst_91 : f32 to vector<2x128xf32>
    %134 = arith.cmpf oeq, %4, %133 : vector<2x128xf32>
    %135 = arith.extui %134 : vector<2x128xi1> to vector<2x128xi32>
    %136 = arith.sitofp %135 : vector<2x128xi32> to vector<2x128xf32>
    %137 = arith.mulf %130, %136 : vector<2x128xf32>
    %cst_92 = arith.constant dense<0.000000e+00> : vector<128xf32>
    %138 = vector.multi_reduction <add>, %137, %cst_92 [0] : vector<2x128xf32> to vector<128xf32>
    %139 = arith.addf %132, %138 : vector<128xf32>
    %c0_93 = arith.constant 0 : index
    %c3_94 = arith.constant 3 : index
    %c0_95 = arith.constant 0 : index
    %140 = vector.load %arg4[%c0_93, %c3_94, %c0_95] : memref<1x16x128xf32, #tpu.memory_space<vmem>>, vector<1x1x128xf32>
    %141 = vector.shape_cast %140 : vector<1x1x128xf32> to vector<128xf32>
    %142 = vector.shape_cast %139 : vector<128xf32> to vector<1x1x128xf32>
    tpu.vector_store %arg4[%c0_93, %c3_94, %c0_95], %142 {strides = array<i32>} : memref<1x16x128xf32, #tpu.memory_space<vmem>>, vector<1x1x128xf32>,
    %c0_96 = arith.constant 0 : index
    %c6 = arith.constant 6 : index
    %c0_97 = arith.constant 0 : index
    %143 = vector.load %arg4[%c0_96, %c6, %c0_97] : memref<1x16x128xf32, #tpu.memory_space<vmem>>, vector<1x1x128xf32>
    %144 = vector.shape_cast %143 : vector<1x1x128xf32> to vector<128xf32>
    %cst_98 = arith.constant dense<0.000000e+00> : vector<128xf32>
    %145 = vector.multi_reduction <add>, %130, %cst_98 [0] : vector<2x128xf32> to vector<128xf32>
    %146 = arith.addf %144, %145 : vector<128xf32>
    %c0_99 = arith.constant 0 : index
    %c6_100 = arith.constant 6 : index
    %c0_101 = arith.constant 0 : index
    %147 = vector.load %arg4[%c0_99, %c6_100, %c0_101] : memref<1x16x128xf32, #tpu.memory_space<vmem>>, vector<1x1x128xf32>
    %148 = vector.shape_cast %147 : vector<1x1x128xf32> to vector<128xf32>
    %149 = vector.shape_cast %146 : vector<128xf32> to vector<1x1x128xf32>
    tpu.vector_store %arg4[%c0_99, %c6_100, %c0_101], %149 {strides = array<i32>} : memref<1x16x128xf32, #tpu.memory_space<vmem>>, vector<1x1x128xf32>,
    return
  }
  func.func @transform_0(%arg0: i32, %arg1: i32) -> (i32, i32, i32, i32) {
    %c0_i32 = arith.constant 0 : i32
    %c0_i32_0 = arith.constant 0 : i32
    %c0_i32_1 = arith.constant 0 : i32
    return %arg0, %c0_i32, %arg1, %c0_i32_0 : i32, i32, i32, i32
  }
  func.func @transform_1(%arg0: i32, %arg1: i32) -> (i32, i32, i32) {
    %c0_i32 = arith.constant 0 : i32
    %c0_i32_0 = arith.constant 0 : i32
    return %arg0, %arg1, %c0_i32 : i32, i32, i32
  }
  func.func @transform_2(%arg0: i32, %arg1: i32) -> (i32, i32, i32) {
    %c0_i32 = arith.constant 0 : i32
    %c0_i32_0 = arith.constant 0 : i32
    %c0_i32_1 = arith.constant 0 : i32
    return %arg0, %c0_i32, %c0_i32_0 : i32, i32, i32
  }
}

</mosaic_0001>

<llo_original>
// kernel: tpu_custom_call.1
$region0: #{tpu_custom_call.1}
  #allocation0 [shape = 'u32[]', space=smem, size = 0x4, offset = 0x4, fixed_abs, tag = 'smem constant byte address 0x4 - core index']
  #allocation1 [shape = 'u32[144,128]{1,0:T(1,128)}', space=vmem, size = 0x12000, scoped, tag = 'internal scratch']
  %s0 = inlined_call_operand.hbm [shape: f32[2,4,2,128], index: 0, kind: input, shape index: {}]
  %s1 = inlined_call_operand.hbm [shape: f32[2,2,128], index: 1, kind: input, shape index: {}]
  %s2 = inlined_call_operand.hbm [shape: f32[2,16,128], index: 2, kind: output, shape index: {}]
  %s3 = sld [smem:[#allocation0]]
  $region53: #{tpu_custom_call.1} parent=0
    _
  %s5 = ssub.s32 1, %s3
  %s6 = scalar_select 0, %s5, %s3
  $region1: #{tpu_custom_call.1} parent=0
    #allocation2 [shape = 'u8[8192]{0}', space=vmem, size = 0x2000, scoped, tag = 'input window, operand 0']
    #allocation3 [shape = 's32[2]{0}', space=sflag, size = 0x8, scoped, tag = 'scoped memory for tpu_custom_call.1']
    #allocation4 [shape = 's32[2]{0}', space=sflag, size = 0x8, scoped, tag = 'scoped memory for tpu_custom_call.1']
    #allocation5 [shape = 'u8[2048]{0}', space=vmem, size = 0x800, scoped, tag = 'input window, operand 1']
    #allocation6 [shape = 's32[2]{0}', space=sflag, size = 0x8, scoped, tag = 'scoped memory for tpu_custom_call.1']
    #allocation7 [shape = 'u8[16384]{0}', space=vmem, size = 0x4000, scoped, tag = 'output window, operand 0']
    %7 = vsyncpa [#allocation3], 0
    %s8 = scalar_lea.sflag [#allocation3], 1
    %9 = vsyncpa %s8, 0
    %10 = vsyncpa [#allocation6], 0
    %s11 = scalar_lea.sflag [#allocation6], 1
    %12 = vsyncpa %s11, 0
    %13 = vsyncpa [#allocation4], 0
    %s14 = scalar_lea.sflag [#allocation4], 1
    %15 = vsyncpa %s14, 0
    loop: start=0, step=1, limit=4
    $region2: #{tpu_custom_call.1} parent=1 // loop_pre_header
      _
    $region3: #{tpu_custom_call.1} parent=1 // loop_header
      %s17 = sphi 0, %s21
      %p18 = scmp.ge.s32.totalorder %s17, 4
      %s24 = sphi 0, %s36
      %s25 = sphi 0, %s32
      %s26 = sphi 0, %s24
      %s27 = sphi 0, %s25
      %s28 = sphi 0, %s26
      %s29 = sphi 0, %s27
      %s41 = sphi 0, %s43
      %s44 = sphi 0, %s41
      %s45 = sphi 0, %s44
      %s61 = sphi 0, %s45
      %s69 = sphi 0, %s71
      %s72 = sphi 0, %s69
      %s73 = sphi 0, %s72
      %s89 = sphi 0, %s73
      %s95 = sphi 0, %s97
      %s98 = sphi 0, %s95
      %s99 = sphi 0, %s98
      %s115 = sphi 0, %s99
    $region4: #{tpu_custom_call.1} parent=1 // loop_header_branch
      %20 = sbr.rel (%p18) target = $region8
    $region5: #{tpu_custom_call.1} parent=1 // loop_body
      %s22 = ssub.s32 %s17, 1
      %s23 = ssub.s32 %s17, 2
      %s30 = sadd.s32 1, %s25
      %p31 = scmp.ge.s32.totalorder %s30, 1
      %s32 = scalar_select %p31, 0, %s30
      %s33 = sadd.s32 1, %s24
      %s34 = scalar_select %p31, %s33, %s24
      %p35 = scmp.ge.s32.totalorder %s34, 2
      %s36 = scalar_select %p35, 0, %s34
      %s37 = ssub.s32 %s24, %s36
      %s38 = ssub.s32 %s25, %s32
      %s39 = sor.u32 %s37, %s38
      %p40 = scmp.eq.s32.totalorder %s39, 0
      %s42 = sadd.s32 %s41, 1
      %s43 = scalar_select %p40, %s41, %s42
      %p46 = pneg %p40
      %p47 = scmp.eq.s32.totalorder %s17, 1
      %p48 = por %p46, %p47
      %p49 = scmp.ne.s32.totalorder %s41, %s44
      %p50 = scmp.eq.s32.totalorder %s17, 0
      %p51 = por %p49, %p50
      %p52 = scmp.ne.s32.totalorder %s41, %s44
      %p53 = scmp.eq.s32.totalorder %s22, 1
      %p54 = por %p52, %p53
      %p55 = scmp.ne.s32.totalorder %s44, %s45
      %p56 = scmp.eq.s32.totalorder %s22, 0
      %p57 = por %p55, %p56
      %p58 = scmp.ne.s32.totalorder %s44, %s45
      %p59 = scmp.eq.s32.totalorder %s23, 1
      %p60 = por %p58, %p59
      %p62 = scmp.ne.s32.totalorder %s45, %s61
      %p63 = scmp.eq.s32.totalorder %s23, 0
      %p64 = por %p62, %p63
      %s65 = ssub.s32 %s24, %s36
      %s66 = ssub.s32 %s25, %s32
      %s67 = sor.u32 %s65, %s66
      %p68 = scmp.eq.s32.totalorder %s67, 0
      %s70 = sadd.s32 %s69, 1
      %s71 = scalar_select %p68, %s69, %s70
      %p74 = pneg %p68
      %p75 = scmp.eq.s32.totalorder %s17, 1
      %p76 = por %p74, %p75
      %p77 = scmp.ne.s32.totalorder %s69, %s72
      %p78 = scmp.eq.s32.totalorder %s17, 0
      %p79 = por %p77, %p78
      %p80 = scmp.ne.s32.totalorder %s69, %s72
      %p81 = scmp.eq.s32.totalorder %s22, 1
      %p82 = por %p80, %p81
      %p83 = scmp.ne.s32.totalorder %s72, %s73
      %p84 = scmp.eq.s32.totalorder %s22, 0
      %p85 = por %p83, %p84
      %p86 = scmp.ne.s32.totalorder %s72, %s73
      %p87 = scmp.eq.s32.totalorder %s23, 1
      %p88 = por %p86, %p87
      %p90 = scmp.ne.s32.totalorder %s73, %s89
      %p91 = scmp.eq.s32.totalorder %s23, 0
      %p92 = por %p90, %p91
      %s93 = ssub.s32 %s24, %s36
      %p94 = scmp.eq.s32.totalorder %s93, 0
      %s96 = sadd.s32 %s95, 1
      %s97 = scalar_select %p94, %s95, %s96
      %p100 = pneg %p94
      %p101 = scmp.eq.s32.totalorder %s17, 1
      %p102 = por %p100, %p101
      %p103 = scmp.ne.s32.totalorder %s95, %s98
      %p104 = scmp.eq.s32.totalorder %s17, 0
      %p105 = por %p103, %p104
      %p106 = scmp.ne.s32.totalorder %s95, %s98
      %p107 = scmp.eq.s32.totalorder %s22, 1
      %p108 = por %p106, %p107
      %p109 = scmp.ne.s32.totalorder %s98, %s99
      %p110 = scmp.eq.s32.totalorder %s22, 0
      %p111 = por %p109, %p110
      %p112 = scmp.ne.s32.totalorder %s98, %s99
      %p113 = scmp.eq.s32.totalorder %s23, 1
      %p114 = por %p112, %p113
      %p116 = scmp.ne.s32.totalorder %s99, %s115
      %p117 = scmp.eq.s32.totalorder %s23, 0
      %p118 = por %p116, %p117
      %p119 = scmp.le.s32.totalorder 1, %s17
      %p120 = scmp.lt.s32.totalorder %s17, 3
      %p121 = pnand %p119, %p120
      %p122 = pneg %p121
      // Predicated region
      $region9: #{tpu_custom_call.1} parent=5 // pred_check
        _
      $region10: #{tpu_custom_call.1} parent=5 // pred_check_branch
        %124 = sbr.rel (%p121) target = $region12
      $region11: #{tpu_custom_call.1} parent=5 // pred_region
        %s125 = ssub.s32 %s17, 1
      $region12: #{tpu_custom_call.1} parent=5 // pred_fallthru
        _
      %p126 = scmp.lt.s32.totalorder %s17, 2
      // Predicated region
      $region13: #{tpu_custom_call.1} parent=5 // pred_check
        %p127 = pneg %p126
      $region14: #{tpu_custom_call.1} parent=5 // pred_check_branch
        %129 = sbr.rel (%p127) target = $region16
      $region15: #{tpu_custom_call.1} parent=5 // pred_region
        // Predicated region
        $region17: #{tpu_custom_call.1} parent=15 // pred_check
          %p130 = pneg %p51
        $region18: #{tpu_custom_call.1} parent=15 // pred_check_branch
          %132 = sbr.rel (%p130) target = $region20
        $region19: #{tpu_custom_call.1} parent=15 // pred_region
          %s133 = sand.u32 %s41, 1
          %s134 = scalar_lea.sflag [#allocation3], %s133
          %s135 = sand.u32 %s41, 1
          %s136 = smul.addr %s135, 8
          %s137 = scalar_lea.vmem [#allocation2], %s136
          %s139 = ssub.s32 128, 128
          %140 = vsyncadd %s134, %s139
          %s141 = smul.addr %s24, 4
          %s142 = sadd.s32 %s25, %s141
          %s143 = smul.addr %s142, 32
          %s144 = scalar_lea.hbm %s0, %s143
          %s145 = sshll.u32 %s137, 4
          %s146 = int_to_ptr.vmem [resolvable:$true] %s145
          %151 = dma.hbm_to_vmem [thread:$0]  %s144, 128, %s146, %s134, 32, 32, 2
        $region20: #{tpu_custom_call.1} parent=15 // pred_fallthru
          _
        // Predicated region
        $region21: #{tpu_custom_call.1} parent=15 // pred_check
          %p152 = pneg %p79
        $region22: #{tpu_custom_call.1} parent=15 // pred_check_branch
          %154 = sbr.rel (%p152) target = $region24
        $region23: #{tpu_custom_call.1} parent=15 // pred_region
          %s155 = sand.u32 %s69, 1
          %s156 = scalar_lea.sflag [#allocation6], %s155
          %s157 = sand.u32 %s69, 1
          %s158 = smul.addr %s157, 2
          %s159 = scalar_lea.vmem [#allocation5], %s158
          %s161 = ssub.s32 32, 32
          %162 = vsyncadd %s156, %s161
          %s163 = sadd.s32 %s25, %s24
          %s164 = smul.addr %s163, 32
          %s165 = scalar_lea.hbm %s1, %s164
          %s167 = sshll.u32 %s159, 4
          %s168 = int_to_ptr.vmem [resolvable:$true] %s167
          %170 = dma.hbm_to_vmem [thread:$0]  %s165, 32, %s168, %s156
        $region24: #{tpu_custom_call.1} parent=15 // pred_fallthru
          _
      $region16: #{tpu_custom_call.1} parent=5 // pred_fallthru
        _
      %p171 = scmp.le.s32.totalorder 1, %s17
      %p172 = scmp.lt.s32.totalorder %s17, 3
      %p173 = pnand %p171, %p172
      %p174 = pneg %p173
      // Predicated region
      $region25: #{tpu_custom_call.1} parent=5 // pred_check
        _
      $region26: #{tpu_custom_call.1} parent=5 // pred_check_branch
        %176 = sbr.rel (%p173) target = $region28
      $region27: #{tpu_custom_call.1} parent=5 // pred_region
        %s177 = ssub.s32 %s17, 1
        %s178 = sand.u32 %s44, 1
        %s179 = scalar_lea.sflag [#allocation3], %s178
        %s180 = sand.u32 %s44, 1
        %s181 = smul.addr %s180, 8
        %s182 = scalar_lea.vmem [#allocation2], %s181
        // Predicated region
        $region29: #{tpu_custom_call.1} parent=27 // pred_check
          %p183 = pneg %p57
        $region30: #{tpu_custom_call.1} parent=27 // pred_check_branch
          %185 = sbr.rel (%p183) target = $region32
        $region31: #{tpu_custom_call.1} parent=27 // pred_region
          %186 = dma.done %s179, 128
        $region32: #{tpu_custom_call.1} parent=27 // pred_fallthru
          _
        %s187 = sand.u32 %s72, 1
        %s188 = scalar_lea.sflag [#allocation6], %s187
        %s189 = sand.u32 %s72, 1
        %s190 = smul.addr %s189, 2
        %s191 = scalar_lea.vmem [#allocation5], %s190
        // Predicated region
        $region33: #{tpu_custom_call.1} parent=27 // pred_check
          %p192 = pneg %p85
        $region34: #{tpu_custom_call.1} parent=27 // pred_check_branch
          %194 = sbr.rel (%p192) target = $region36
        $region35: #{tpu_custom_call.1} parent=27 // pred_region
          %195 = dma.done %s188, 32
        $region36: #{tpu_custom_call.1} parent=27 // pred_fallthru
          _
        %s196 = sand.u32 %s44, 1
        %s197 = scalar_lea.sflag [#allocation3], %s196
        %s198 = sand.u32 %s44, 1
        %s199 = smul.addr %s198, 8
        %s200 = scalar_lea.vmem [#allocation2], %s199
        %p201 = pneg %p57
        %p202 = pneg %p54
        %s203 = sand.u32 %s72, 1
        %s204 = scalar_lea.sflag [#allocation6], %s203
        %s205 = sand.u32 %s72, 1
        %s206 = smul.addr %s205, 2
        %s207 = scalar_lea.vmem [#allocation5], %s206
        %p208 = pneg %p85
        %p209 = pneg %p82
        %p210 = pneg %p111
        %p211 = pneg %p108
        %s212 = sand.u32 %s98, 1
        %s213 = scalar_lea.sflag [#allocation4], %s212
        %s214 = sand.u32 %s98, 1
        %s215 = smul.addr %s214, 16
        %s216 = scalar_lea.vmem [#allocation7], %s215
        %p217 = scmp.eq.s32.totalorder %s27, 0
        // Predicated region
        $region37: #{tpu_custom_call.1} parent=27 // pred_check
          %p218 = pneg %p217
        $region38: #{tpu_custom_call.1} parent=27 // pred_check_branch
          %220 = sbr.rel (%p218) target = $region40
        $region39: #{tpu_custom_call.1} parent=27 // pred_region
          %221 = vst [vmem:[%s216] sm:$0xff] 0.0
          %222 = vst [vmem:[%s216 + $0x8] sm:$0xff] 0.0
        $region40: #{tpu_custom_call.1} parent=27 // pred_fallthru
          _
        %v223 = vld [vmem:[%s191] sm:$0x3]
        %v224 = vld [vmem:[%s182] sm:$0x3]
        %vm225 = vcmp.eq.f32.partialorder %v223, 0.0
        %v226 = vsel %vm225, 1, 0
        %v227 = vcvt.s32.f32 %v226
        %v228 = vmul.f32 %v224, %v227
        %s229 = scalar_lea.vmem %s182, 2 [#allocation2]
        %v230 = vld [vmem:[%s229] sm:$0x3]
        %vm231 = vcmp.eq.f32.partialorder %v223, 1.0
        %v232 = vsel %vm231, 1, 0
        %v233 = vcvt.s32.f32 %v232
        %v234 = vmax.f32 %v224, %v230
        %v235 = vmul.f32 %v230, %v233
        %v236 = vadd.f32 %v228, %v235
        %v237 = vld [vmem:[%s216 + $0x7] sm:$0x1]
        %vm238 = vcmask 1041408
        %v239 = vsel %vm238, %v233, 0.0
        %v240 = vrot.slane %v239, 4
        %v241 = vadd.f32 %v239, %v240
        %v242 = vrot.slane %v241, 2
        %v243 = vadd.f32 %v241, %v242
        %v244 = vrot.slane %v243, 1
        %v245 = vadd.f32 %v243, %v244
        %v246 = vadd.f32 %v237, %v245
        %247 = vst [vmem:[%s216 + $0x7] sm:$0x1] %v246
        %s248 = scalar_lea.vmem %s182, 4 [#allocation2]
        %v249 = vld [vmem:[%s248] sm:$0x3]
        %vm250 = vcmp.eq.f32.partialorder %v223, 2.0
        %v251 = vsel %vm250, 1, 0
        %v252 = vcvt.s32.f32 %v251
        %v253 = vmax.f32 %v234, %v249
        %v254 = vmul.f32 %v249, %v252
        %v255 = vadd.f32 %v236, %v254
        %v256 = vld [vmem:[%s216 + $0x8] sm:$0x1]
        %v257 = vsel %vm238, %v252, 0.0
        %v258 = vrot.slane %v257, 4
        %v259 = vadd.f32 %v257, %v258
        %v260 = vrot.slane %v259, 2
        %v261 = vadd.f32 %v259, %v260
        %v262 = vrot.slane %v261, 1
        %v263 = vadd.f32 %v261, %v262
        %v264 = vadd.f32 %v256, %v263
        %265 = vst [vmem:[%s216 + $0x8] sm:$0x1] %v264
        %s266 = scalar_lea.vmem %s182, 6 [#allocation2]
        %v267 = vld [vmem:[%s266] sm:$0x3]
        %vm268 = vcmp.eq.f32.partialorder %v223, 3.0
        %v269 = vsel %vm268, 1, 0
        %v270 = vcvt.s32.f32 %v269
        %v271 = vmax.f32 %v253, %v267
        %v272 = vmul.f32 %v267, %v270
        %v273 = vadd.f32 %v255, %v272
        %v274 = vld [vmem:[%s216 + $0x9] sm:$0x1]
        %v275 = vsel %vm238, %v270, 0.0
        %v276 = vrot.slane %v275, 4
        %v277 = vadd.f32 %v275, %v276
        %v278 = vrot.slane %v277, 2
        %v279 = vadd.f32 %v277, %v278
        %v280 = vrot.slane %v279, 1
        %v281 = vadd.f32 %v279, %v280
        %v282 = vadd.f32 %v274, %v281
        %283 = vst [vmem:[%s216 + $0x9] sm:$0x1] %v282
        %v284 = vld [vmem:[%s182] sm:$0x3]
        %v285 = vsub.f32 %v284, %v271
        %v286 = vmul.f32 %v285, 1.442695
        %v287 = vpow.pop %v286
        %v288 = vld [vmem:[%s229] sm:$0x3]
        %v289 = vsub.f32 %v288, %v271
        %v290 = vmul.f32 %v289, 1.442695
        %v291 = vpow.pop %v290
        %v292 = vadd.f32 %v287, %v291
        %v293 = vld [vmem:[%s248] sm:$0x3]
        %v294 = vsub.f32 %v293, %v271
        %v295 = vmul.f32 %v294, 1.442695
        %v296 = vpow.pop %v295
        %v297 = vadd.f32 %v292, %v296
        %v298 = vld [vmem:[%s266] sm:$0x3]
        %v299 = vsub.f32 %v298, %v271
        %v300 = vmul.f32 %v299, 1.442695
        %v301 = vpow.pop %v300
        %v302 = vadd.f32 %v297, %v301
        %v303 = vrcp.pop %v302
        %v304 = vlog2.pop %v302
        %v305 = vmul.f32 %v304, 0.6931472
        %v306 = vadd.f32 %v271, %v305
        %v307 = vsub.f32 %v306, %v273
        %v308 = vld [vmem:[%s216] sm:$0x1]
        %v309 = vsel %vm238, %v307, 0.0
        %v310 = vrot.slane %v309, 4
        %v311 = vadd.f32 %v309, %v310
        %v312 = vrot.slane %v311, 2
        %v313 = vadd.f32 %v311, %v312
        %v314 = vrot.slane %v313, 1
        %v315 = vadd.f32 %v313, %v314
        %v316 = vadd.f32 %v308, %v315
        %317 = vst [vmem:[%s216] sm:$0x1] %v316
        %v318 = vmul.f32 %v291, %v303
        %v319 = vld [vmem:[%s216 + $0x1] sm:$0x1]
        %v320 = vmul.f32 %v318, %v233
        %v321 = vsel %vm238, %v320, 0.0
        %v322 = vrot.slane %v321, 4
        %v323 = vadd.f32 %v321, %v322
        %v324 = vrot.slane %v323, 2
        %v325 = vadd.f32 %v323, %v324
        %v326 = vrot.slane %v325, 1
        %v327 = vadd.f32 %v325, %v326
        %v328 = vadd.f32 %v319, %v327
        %329 = vst [vmem:[%s216 + $0x1] sm:$0x1] %v328
        %v330 = vld [vmem:[%s216 + $0x4] sm:$0x1]
        %v331 = vsel %vm238, %v318, 0.0
        %v332 = vrot.slane %v331, 4
        %v333 = vadd.f32 %v331, %v332
        %v334 = vrot.slane %v333, 2
        %v335 = vadd.f32 %v333, %v334
        %v336 = vrot.slane %v335, 1
        %v337 = vadd.f32 %v335, %v336
        %v338 = vadd.f32 %v330, %v337
        %339 = vst [vmem:[%s216 + $0x4] sm:$0x1] %v338
        %v340 = vmul.f32 %v296, %v303
        %v341 = vld [vmem:[%s216 + $0x2] sm:$0x1]
        %v342 = vmul.f32 %v340, %v252
        %v343 = vsel %vm238, %v342, 0.0
        %v344 = vrot.slane %v343, 4
        %v345 = vadd.f32 %v343, %v344
        %v346 = vrot.slane %v345, 2
        %v347 = vadd.f32 %v345, %v346
        %v348 = vrot.slane %v347, 1
        %v349 = vadd.f32 %v347, %v348
        %v350 = vadd.f32 %v341, %v349
        %351 = vst [vmem:[%s216 + $0x2] sm:$0x1] %v350
        %v352 = vld [vmem:[%s216 + $0x5] sm:$0x1]
        %v353 = vsel %vm238, %v340, 0.0
        %v354 = vrot.slane %v353, 4
        %v355 = vadd.f32 %v353, %v354
        %v356 = vrot.slane %v355, 2
        %v357 = vadd.f32 %v355, %v356
        %v358 = vrot.slane %v357, 1
        %v359 = vadd.f32 %v357, %v358
        %v360 = vadd.f32 %v352, %v359
        %361 = vst [vmem:[%s216 + $0x5] sm:$0x1] %v360
        %v362 = vmul.f32 %v301, %v303
        %v363 = vld [vmem:[%s216 + $0x3] sm:$0x1]
        %v364 = vmul.f32 %v362, %v270
        %v365 = vsel %vm238, %v364, 0.0
        %v366 = vrot.slane %v365, 4
        %v367 = vadd.f32 %v365, %v366
        %v368 = vrot.slane %v367, 2
        %v369 = vadd.f32 %v367, %v368
        %v370 = vrot.slane %v369, 1
        %v371 = vadd.f32 %v369, %v370
        %v372 = vadd.f32 %v363, %v371
        %373 = vst [vmem:[%s216 + $0x3] sm:$0x1] %v372
        %v374 = vld [vmem:[%s216 + $0x6] sm:$0x1]
        %v375 = vsel %vm238, %v362, 0.0
        %v376 = vrot.slane %v375, 4
        %v377 = vadd.f32 %v375, %v376
        %v378 = vrot.slane %v377, 2
        %v379 = vadd.f32 %v377, %v378
        %v380 = vrot.slane %v379, 1
        %v381 = vadd.f32 %v379, %v380
        %v382 = vadd.f32 %v374, %v381
        %383 = vst [vmem:[%s216 + $0x6] sm:$0x1] %v382
        %s384 = sand.u32 %s98, 1
        %s385 = scalar_lea.sflag [#allocation4], %s384
        %s386 = sand.u32 %s98, 1
        %s387 = smul.addr %s386, 16
        %s388 = scalar_lea.vmem [#allocation7], %s387
        // Predicated region
        $region41: #{tpu_custom_call.1} parent=27 // pred_check
          %p389 = pneg %p108
        $region42: #{tpu_custom_call.1} parent=27 // pred_check_branch
          %391 = sbr.rel (%p389) target = $region44
        $region43: #{tpu_custom_call.1} parent=27 // pred_region
          %s393 = ssub.s32 256, 256
          %394 = vsyncadd %s385, %s393
          %s395 = smul.addr %s26, 2
          %s396 = smul.addr %s395, 128
          %s397 = scalar_lea.hbm %s2, %s396
          %s398 = sshll.u32 %s388, 4
          %s399 = int_to_ptr.vmem [resolvable:$true] %s398
          %404 = dma.vmem_to_hbm [thread:$0]  %s399, 256, %s397, %s385, 128, 128, 8
        $region44: #{tpu_custom_call.1} parent=27 // pred_fallthru
          _
      $region28: #{tpu_custom_call.1} parent=5 // pred_fallthru
        _
      %p405 = scmp.le.s32.totalorder 2, %s17
      // Predicated region
      $region45: #{tpu_custom_call.1} parent=5 // pred_check
        %p406 = pneg %p405
      $region46: #{tpu_custom_call.1} parent=5 // pred_check_branch
        %408 = sbr.rel (%p406) target = $region48
      $region47: #{tpu_custom_call.1} parent=5 // pred_region
        %s409 = ssub.s32 %s17, 2
        // Predicated region
        $region49: #{tpu_custom_call.1} parent=47 // pred_check
          %p410 = pneg %p114
        $region50: #{tpu_custom_call.1} parent=47 // pred_check_branch
          %412 = sbr.rel (%p410) target = $region52
        $region51: #{tpu_custom_call.1} parent=47 // pred_region
          %s413 = sand.u32 %s99, 1
          %s414 = scalar_lea.sflag [#allocation4], %s413
          %s415 = sand.u32 %s99, 1
          %s416 = smul.addr %s415, 16
          %s417 = scalar_lea.vmem [#allocation7], %s416
          %418 = dma.done %s414, 256
        $region52: #{tpu_custom_call.1} parent=47 // pred_fallthru
          _
      $region48: #{tpu_custom_call.1} parent=5 // pred_fallthru
        _
    $region6: #{tpu_custom_call.1} parent=1 // loop_footer
      %s21 = sadd.s32 1, %s17
    $region7: #{tpu_custom_call.1} parent=1 // loop_footer_branch
      %16 = sbr.rel target = $region3
    $region8: #{tpu_custom_call.1} parent=1 // loop_exit
      _
    %419 = vsyncpa [#allocation3], 1
    %s420 = scalar_lea.sflag [#allocation3], 1
    %421 = vsyncpa %s420, 1
    %422 = vsyncpa [#allocation6], 1
    %s423 = scalar_lea.sflag [#allocation6], 1
    %424 = vsyncpa %s423, 1
    %425 = vsyncpa [#allocation4], 1
    %s426 = scalar_lea.sflag [#allocation4], 1
    %427 = vsyncpa %s426, 1

</llo_original>
